<compile_context>
chip_gen: v5e
topology: v5e:2x2
jax: 0.10.0
libtpu: 0.0.40
codegen_flags: <defaults>
</compile_context>

<pallas_src>
import functools

import jax
import jax.numpy as jnp
from jax.experimental import pallas as pl
from jax.experimental.pallas import tpu as pltpu


def fpn_kernel(x_ref, w_ref, b_ref, m1_ref, m2_ref, out_ref):
    x = x_ref[...]            # (bm, L) f32
    w = w_ref[...]            # (L, T)  f32
    b = b_ref[...]            # (1, T)  f32

    # ---- Linear layer (MXU) ----
    logits = jnp.dot(x, w, preferred_element_type=jnp.float32) + b   # (bm, T)

    # ---- LogSoftmax along dim=1, reusing the exp for q_probs ----
    m = jnp.max(logits, axis=1, keepdims=True)
    shifted = logits - m
    e = jnp.exp(shifted)                                   # single EUP exp pass
    s = jnp.sum(e, axis=1, keepdims=True)
    log_q = shifted - jnp.log(s)                           # (bm, T)
    # approx=False keeps taus within 1e-5 of the exact reference.
    q_probs = e * pl.reciprocal(s, approx=False)           # (bm, T)

    # ---- Packed lane-dense output via two MXU matmuls against constant
    #      placement masks (hoisted to the wrapper; VMEM-resident here).
    #   lanes 1..T      : inclusive cumsum  -> taus[:, 1:]
    #   lanes T+1..2T   : midpoints         -> taus_
    #   lane  2T+1      : entropy = -sum_k (log_q * q_probs)_k
    packed = (jnp.dot(q_probs, m1_ref[...], preferred_element_type=jnp.float32)
              + jnp.dot(log_q * q_probs, m2_ref[...],
                        preferred_element_type=jnp.float32))

    # Single lane-dense store -> one output DMA, unmasked vst.
    out_ref[...] = packed


def _build_placement_masks(T, out_w):
    """m1: (T, out_w) cumsum + midpoint placement; m2: (T, out_w) entropy lane."""
    row = jnp.arange(T, dtype=jnp.int32)[:, None]        # input index k
    col = jnp.arange(out_w, dtype=jnp.int32)[None, :]    # output lane

    # lanes 1..T : inclusive cumsum -> taus[:, 1:]
    in_taus = (col >= 1) & (col <= T)
    taus_m = jnp.where(in_taus & (row <= col - 1), 1.0, 0.0)

    # lanes T+1..2T : midpoints taus_[i] = sum_{k<i} q_k + 0.5*q_i, i = col-(T+1)
    i_idx = col - (T + 1)
    in_hat = (col >= T + 1) & (col <= 2 * T)
    hat_m = jnp.where(in_hat & (row < i_idx), 1.0,
                      jnp.where(in_hat & (row == i_idx), 0.5, 0.0))
    m1 = (taus_m + hat_m).astype(jnp.float32)

    # lane 2T+1 : entropy reduction column
    m2 = jnp.broadcast_to(jnp.where(col == 2 * T + 1, -1.0, 0.0),
                          (T, out_w)).astype(jnp.float32)
    return m1, m2


@functools.partial(jax.jit, static_argnames=())
def fpn_forward(x, w, b):
    """x: (B, L) f32, w: (L, T) f32, b: (1, T) f32 ->
    taus (B, T+1), taus_ (B, T), entropy (B, 1)."""
    B, L = x.shape
    T = w.shape[1]
    out_w = max(128, pl.cdiv(2 * T + 2, 128) * 128)        # packed lane-dense width

    # Placement masks built once at trace time; broadcast inputs to the kernel.
    m1, m2 = _build_placement_masks(T, out_w)

    # --- Batch handling: pad to a multiple of 8 (never bm = B fallback). ---
    B_pad = ((B + 7) // 8) * 8
    if B_pad != B:
        x_in = jnp.pad(x, ((0, B_pad - B), (0, 0)))
    else:
        x_in = x

    # Large batch tile (amortize per-step overhead), but keep the parallel
    # grid at >= 2 steps when the batch allows so v7x's two TensorCores
    # both get work.  bm is always a multiple of 8.
    bm = min(B_pad, 1024)
    if B_pad > 8 and B_pad <= bm:
        bm = ((B_pad // 2 + 7) // 8) * 8
    grid = (pl.cdiv(B_pad, bm),)

    packed = pl.pallas_call(
        fpn_kernel,
        out_shape=jax.ShapeDtypeStruct((B_pad, out_w), jnp.float32),
        grid_spec=pltpu.PrefetchScalarGridSpec(
            num_scalar_prefetch=0,
            grid=grid,
            in_specs=[
                pl.BlockSpec((bm, L), lambda i: (i, 0)),      # x: tiled over batch
                pl.BlockSpec((L, T), lambda i: (0, 0)),       # w: broadcast
                pl.BlockSpec((1, T), lambda i: (0, 0)),       # b: broadcast
                pl.BlockSpec((T, out_w), lambda i: (0, 0)),   # m1: broadcast const
                pl.BlockSpec((T, out_w), lambda i: (0, 0)),   # m2: broadcast const
            ],
            out_specs=pl.BlockSpec((bm, out_w), lambda i: (i, 0)),
        ),
        compiler_params=pltpu.CompilerParams(
            dimension_semantics=("parallel",)),
    )(x_in, w, b, m1, m2)

    # Slices are inside the same jit -> fused, no triple re-read of the slab.
    taus = packed[:B, : T + 1]
    taus_hat = packed[:B, T + 1: 2 * T + 1]
    entropy = packed[:B, 2 * T + 1: 2 * T + 2]
    return taus, taus_hat, entropy


def init_fpn_params(key, layer_size, num_tau, gain=0.01):
    """Deterministic xavier_uniform(gain=0.01) weight + uniform bias,
    matching the shapes of nn.Linear(layer_size, num_tau)."""
    kw, kb = jax.random.split(key)
    fan_in, fan_out = layer_size, num_tau
    a = gain * jnp.sqrt(6.0 / (fan_in + fan_out))
    # Stored already transposed: (layer_size, num_tau)
    w = jax.random.uniform(kw, (layer_size, num_tau), jnp.float32, -a, a)
    bound = 1.0 / jnp.sqrt(jnp.float32(fan_in))
    b = jax.random.uniform(kb, (1, num_tau), jnp.float32, -bound, bound)
    return w, b


def fpn_reference(x, w, b):
    """Pure-JAX reference for correctness checking."""
    logits = x @ w + b
    log_q = jax.nn.log_softmax(logits, axis=1)
    q_probs = jnp.exp(log_q)
    taus = jnp.concatenate(
        [jnp.zeros((x.shape[0], 1), jnp.float32), jnp.cumsum(q_probs, axis=1)], axis=1
    )
    taus_ = (taus[:, :-1] + taus[:, 1:]) / 2.0
    entropy = -jnp.sum(log_q * q_probs, axis=-1, keepdims=True)
    return taus, taus_, entropy


if __name__ == "__main__":
    batch = 4
    layer_size = 32
    num_tau = 32

    key = jax.random.PRNGKey(0)
    kx, kp = jax.random.split(key)
    x = jax.random.normal(kx, (batch, layer_size), dtype=jnp.float32)
    w, b = init_fpn_params(kp, layer_size, num_tau)

    taus, taus_hat, entropy = fpn_forward(x, w, b)
    jax.block_until_ready((taus, taus_hat, entropy))

    # Sanity check against pure-JAX reference
    r_taus, r_taus_hat, r_ent = fpn_reference(x, w, b)
    assert taus.shape == (batch, num_tau + 1)
    assert taus_hat.shape == (batch, num_tau)
    assert entropy.shape == (batch, 1)
    assert jnp.allclose(taus, r_taus, atol=1e-5)
    assert jnp.allclose(taus_hat, r_taus_hat, atol=1e-5)
    assert jnp.allclose(entropy, r_ent, atol=1e-5)

    # Also exercise a non-multiple-of-8 batch to cover the padding path.
    x2 = jax.random.normal(jax.random.PRNGKey(1), (batch + 1, layer_size),
                           dtype=jnp.float32)
    t2, th2, e2 = fpn_forward(x2, w, b)
    jax.block_until_ready((t2, th2, e2))
    r_t2, r_th2, r_e2 = fpn_reference(x2, w, b)
    assert jnp.allclose(t2, r_t2, atol=1e-5)
    assert jnp.allclose(th2, r_th2, atol=1e-5)
    assert jnp.allclose(e2, r_e2, atol=1e-5)

    print("KERNEL_OK")
</pallas_src>

<mosaic_0001>
module attributes {stable_mosaic.version = 11 : i64} {
  func.func @fpn_kernel(%arg0: i32, %arg1: memref<8x32xf32, #tpu.memory_space<vmem>>, %arg2: memref<32x32xf32, #tpu.memory_space<vmem>>, %arg3: memref<1x32xf32, #tpu.memory_space<vmem>>, %arg4: memref<32x128xf32, #tpu.memory_space<vmem>>, %arg5: memref<32x128xf32, #tpu.memory_space<vmem>>, %arg6: memref<8x128xf32, #tpu.memory_space<vmem>>) attributes {dimension_semantics = [#tpu.dimension_semantics<parallel>], iteration_bounds = array<i64: 1>, scalar_prefetch = 0 : i64, scratch_operands = 0 : i64, tpu.core_type = #tpu.core_type<tc>, window_params = [{transform_indices = @transform_0, window_bounds = array<i64: 8, 32>}, {pipeline_mode = #tpu.pipeline_mode<synchronous>, transform_indices = @transform_1, window_bounds = array<i64: 32, 32>}, {pipeline_mode = #tpu.pipeline_mode<synchronous>, transform_indices = @transform_2, window_bounds = array<i64: 1, 32>}, {pipeline_mode = #tpu.pipeline_mode<synchronous>, transform_indices = @transform_3, window_bounds = array<i64: 32, 128>}, {pipeline_mode = #tpu.pipeline_mode<synchronous>, transform_indices = @transform_4, window_bounds = array<i64: 32, 128>}, {transform_indices = @transform_5, window_bounds = array<i64: 8, 128>}]} {
    %c0 = arith.constant 0 : index
    %c0_0 = arith.constant 0 : index
    %0 = vector.load %arg1[%c0, %c0_0] : memref<8x32xf32, #tpu.memory_space<vmem>>, vector<8x32xf32>
    %c0_1 = arith.constant 0 : index
    %c0_2 = arith.constant 0 : index
    %1 = vector.load %arg2[%c0_1, %c0_2] : memref<32x32xf32, #tpu.memory_space<vmem>>, vector<32x32xf32>
    %c0_3 = arith.constant 0 : index
    %c0_4 = arith.constant 0 : index
    %2 = vector.load %arg3[%c0_3, %c0_4] : memref<1x32xf32, #tpu.memory_space<vmem>>, vector<1x32xf32>
    %cst = arith.constant dense<0.000000e+00> : vector<8x32xf32>
    %3 = tpu.matmul %0, %1, %cst {dimension_numbers = #tpu.dot_dimension_numbers<[1], [0], [0], [1], [0, 0, 1, 1], [], []>} : vector<8x32xf32>, vector<32x32xf32>, vector<8x32xf32> -> vector<8x32xf32>
    %4 = vector.broadcast %2 : vector<1x32xf32> to vector<8x32xf32>
    %5 = arith.addf %3, %4 : vector<8x32xf32>
    %cst_5 = arith.constant dense<0xFF800000> : vector<8xf32>
    %6 = vector.multi_reduction <maximumf>, %5, %cst_5 [1] : vector<8x32xf32> to vector<8xf32>
    %7 = vector.shape_cast %6 : vector<8xf32> to vector<8x1xf32>
    %8 = vector.broadcast %7 : vector<8x1xf32> to vector<8x32xf32>
    %9 = arith.subf %5, %8 : vector<8x32xf32>
    %10 = math.exp %9 : vector<8x32xf32>
    %cst_6 = arith.constant dense<0.000000e+00> : vector<8xf32>
    %11 = vector.multi_reduction <add>, %10, %cst_6 [1] : vector<8x32xf32> to vector<8xf32>
    %12 = vector.shape_cast %11 : vector<8xf32> to vector<8x1xf32>
    %13 = math.log %12 : vector<8x1xf32>
    %14 = vector.broadcast %13 : vector<8x1xf32> to vector<8x32xf32>
    %15 = arith.subf %9, %14 : vector<8x32xf32>
    %16 = tpu.reciprocal %12 : vector<8x1xf32> -> vector<8x1xf32>
    %17 = vector.broadcast %16 : vector<8x1xf32> to vector<8x32xf32>
    %18 = arith.mulf %10, %17 : vector<8x32xf32>
    %c0_7 = arith.constant 0 : index
    %c0_8 = arith.constant 0 : index
    %19 = vector.load %arg4[%c0_7, %c0_8] : memref<32x128xf32, #tpu.memory_space<vmem>>, vector<32x128xf32>
    %cst_9 = arith.constant dense<0.000000e+00> : vector<8x128xf32>
    %20 = tpu.matmul %18, %19, %cst_9 {dimension_numbers = #tpu.dot_dimension_numbers<[1], [0], [0], [1], [0, 0, 1, 1], [], []>} : vector<8x32xf32>, vector<32x128xf32>, vector<8x128xf32> -> vector<8x128xf32>
    %21 = arith.mulf %15, %18 : vector<8x32xf32>
    %c0_10 = arith.constant 0 : index
    %c0_11 = arith.constant 0 : index
    %22 = vector.load %arg5[%c0_10, %c0_11] : memref<32x128xf32, #tpu.memory_space<vmem>>, vector<32x128xf32>
    %cst_12 = arith.constant dense<0.000000e+00> : vector<8x128xf32>
    %23 = tpu.matmul %21, %22, %cst_12 {dimension_numbers = #tpu.dot_dimension_numbers<[1], [0], [0], [1], [0, 0, 1, 1], [], []>} : vector<8x32xf32>, vector<32x128xf32>, vector<8x128xf32> -> vector<8x128xf32>
    %24 = arith.addf %20, %23 : vector<8x128xf32>
    %c0_13 = arith.constant 0 : index
    %c0_14 = arith.constant 0 : index
    %25 = vector.load %arg6[%c0_13, %c0_14] : memref<8x128xf32, #tpu.memory_space<vmem>>, vector<8x128xf32>
    tpu.vector_store %arg6[%c0_13, %c0_14], %24 {strides = array<i32>} : memref<8x128xf32, #tpu.memory_space<vmem>>, vector<8x128xf32>,
    return
  }
  func.func @transform_0(%arg0: i32) -> (i32, i32) {
    %c0_i32 = arith.constant 0 : i32
    %c0_i32_0 = arith.constant 0 : i32
    return %arg0, %c0_i32 : i32, i32
  }
  func.func @transform_1(%arg0: i32) -> (i32, i32) {
    %c0_i32 = arith.constant 0 : i32
    %c0_i32_0 = arith.constant 0 : i32
    %c0_i32_1 = arith.constant 0 : i32
    return %c0_i32, %c0_i32_0 : i32, i32
  }
  func.func @transform_2(%arg0: i32) -> (i32, i32) {
    %c0_i32 = arith.constant 0 : i32
    %c0_i32_0 = arith.constant 0 : i32
    %c0_i32_1 = arith.constant 0 : i32
    return %c0_i32, %c0_i32_0 : i32, i32
  }
  func.func @transform_3(%arg0: i32) -> (i32, i32) {
    %c0_i32 = arith.constant 0 : i32
    %c0_i32_0 = arith.constant 0 : i32
    %c0_i32_1 = arith.constant 0 : i32
    return %c0_i32, %c0_i32_0 : i32, i32
  }
  func.func @transform_4(%arg0: i32) -> (i32, i32) {
    %c0_i32 = arith.constant 0 : i32
    %c0_i32_0 = arith.constant 0 : i32
    %c0_i32_1 = arith.constant 0 : i32
    return %c0_i32, %c0_i32_0 : i32, i32
  }
  func.func @transform_5(%arg0: i32) -> (i32, i32) {
    %c0_i32 = arith.constant 0 : i32
    %c0_i32_0 = arith.constant 0 : i32
    return %arg0, %c0_i32 : i32, i32
  }
}

</mosaic_0001>

<llo_original>
// kernel: fpn_forward.1
$region0: #{fpn_forward.1}
  #allocation0 [shape = 'u32[]', space=smem, size = 0x4, offset = 0x4, fixed_abs, tag = 'smem constant byte address 0x4 - core index']
  #allocation1 [shape = 'u32[72,128]{1,0:T(1,128)}', space=vmem, size = 0x9000, scoped, tag = 'internal scratch']
  %s0 = inlined_call_operand.vmem [shape: f32[8,32], index: 0, kind: input, shape index: {}]
  %s1 = inlined_call_operand.vmem [shape: f32[32,32], index: 1, kind: input, shape index: {}]
  %s2 = inlined_call_operand.vmem [shape: f32[1,32], index: 2, kind: input, shape index: {}]
  %s3 = inlined_call_operand.vmem [shape: f32[32,128], index: 3, kind: input, shape index: {}]
  %s4 = inlined_call_operand.vmem [shape: f32[32,128], index: 4, kind: input, shape index: {}]
  %s5 = inlined_call_operand.vmem [shape: f32[8,128], index: 5, kind: output, shape index: {}]
  %s6 = sld [smem:[#allocation0]]
  $region30: #{fpn_forward.1} parent=0
    _
  %s8 = ssub.s32 1, %s6
  %s9 = scalar_select 0, %s8, %s6
  // Predicated region
  $region2: #{fpn_forward.1} parent=0 // pred_check
    _
  $region3: #{fpn_forward.1} parent=0 // pred_check_branch
    %11 = sbr.rel (0) target = $region5
  $region4: #{fpn_forward.1} parent=0 // pred_region
    _
  $region5: #{fpn_forward.1} parent=0 // pred_fallthru
    _
  // Predicated region
  $region6: #{fpn_forward.1} parent=0 // pred_check
    _
  $region7: #{fpn_forward.1} parent=0 // pred_check_branch
    %13 = sbr.rel (0) target = $region9
  $region8: #{fpn_forward.1} parent=0 // pred_region
    _
  $region9: #{fpn_forward.1} parent=0 // pred_fallthru
    _
  // Predicated region
  $region10: #{fpn_forward.1} parent=0 // pred_check
    _
  $region11: #{fpn_forward.1} parent=0 // pred_check_branch
    %15 = sbr.rel (0) target = $region13
  $region12: #{fpn_forward.1} parent=0 // pred_region
    _
  $region13: #{fpn_forward.1} parent=0 // pred_fallthru
    _
  // Predicated region
  $region14: #{fpn_forward.1} parent=0 // pred_check
    _
  $region15: #{fpn_forward.1} parent=0 // pred_check_branch
    %17 = sbr.rel (0) target = $region17
  $region16: #{fpn_forward.1} parent=0 // pred_region
    _
  $region17: #{fpn_forward.1} parent=0 // pred_fallthru
    _
  // Predicated region
  $region18: #{fpn_forward.1} parent=0 // pred_check
    _
  $region19: #{fpn_forward.1} parent=0 // pred_check_branch
    %19 = sbr.rel (0) target = $region21
  $region20: #{fpn_forward.1} parent=0 // pred_region
    _
  $region21: #{fpn_forward.1} parent=0 // pred_fallthru
    _
  %v20 = vld [vmem:[%s0] sm:$0xff]
  %v21 = vld [vmem:[%s1] sm:$0xff]
  %v22 = vld [vmem:[%s1 + $0x8] sm:$0xff]
  %v23 = vld [vmem:[%s1 + $0x10] sm:$0xff]
  %v24 = vld [vmem:[%s1 + $0x18] sm:$0xff]
  %v25 = vld [vmem:[%s2] sm:$0x1]
  %v27 = vperm.slane %v25, 0
  %vm29 = vcmask 261120
  %v31 = vsel %vm29, %v20, 0
  %33 = vmatpush.msra.mxu0 0.0
  %34 = vmatpush.msra.mxu0 0.0
  %35 = vmatpush.msra.mxu0 0.0
  %36 = vmatpush.msra.mxu0 0.0
  %37 = vmatpush.msra.mxu0 0.0
  %38 = vmatpush.msra.mxu0 0.0
  %39 = vmatpush.msra.mxu0 0.0
  %40 = vmatpush.msra.mxu0 0.0
  %41 = vmatpush.msra.mxu0 0.0
  %42 = vmatpush.msra.mxu0 0.0
  %43 = vmatpush.msra.mxu0 0.0
  %44 = vmatpush.msra.mxu0 0.0
  %45 = vmatpush.msra.mxu0 %v24
  %46 = vmatpush.msra.mxu0 %v23
  %47 = vmatpush.msra.mxu0 %v22
  %48 = vmatpush.msra.mxu0 %v21
  %49 = vmatmul.f32.gmra.mxu0 %v31
  %v50 = vpop.f32.mrf.mxu0
  %v51 = vadd.f32 %v27, %v50
  %52 = vdwg.mxu0
  %v53 = vsel %vm29, %v51, -inf
  %54 = vmax.xlane.f32.xlu0 %v53
  %v55 = vpop.xlane.xlu0 %54
  %v56 = vsub.f32 %v51, %v55
  %v57 = vmul.f32 %v56, 1.442695
  %v58 = vpow.pop %v57
  %v59 = vsel %vm29, %v58, 0.0
  %60 = vadd.xlane.f32.xlu0 %v59
  %v61 = vpop.xlane.xlu0 %60
  %v62 = vlog2.pop %v61
  %v63 = vmul.f32 %v62, 0.6931472
  %v64 = vsub.f32 %v56, %v63
  %v65 = vrcp.pop %v61
  %v66 = vmul.f32 %v61, %v65
  %v67 = vsub.f32 1.0, %v66
  %v68 = vmul.f32 %v65, %v67
  %v69 = vadd.f32 %v65, %v68
  %vm70 = vweird.f32 %v61
  %vm71 = vweird.f32 %v65
  %vm72 = vmor %vm70, %vm71
  %v73 = vsel %vm72, %v65, %v69
  %v74 = vand.u32 2147483647, %v61
  %vm75 = vcmp.eq.f32.partialorder %v74, 8.507059e+37
  %v76 = vand.u32 %v61, 2147483648
  %v77 = vor.u32 1.1754944e-38, %v76
  %v78 = vsel %vm75, %v77, %v73
  %v79 = vmul.f32 %v58, %v78
  %v80 = vld [vmem:[%s3] sm:$0xff]
  %v81 = vld [vmem:[%s3 + $0x8] sm:$0xff]
  %v82 = vld [vmem:[%s3 + $0x10] sm:$0xff]
  %v83 = vld [vmem:[%s3 + $0x18] sm:$0xff]
  %v84 = vmul.f32 %v64, %v79
  %v85 = vld [vmem:[%s4] sm:$0xff]
  %v86 = vld [vmem:[%s4 + $0x8] sm:$0xff]
  %v87 = vld [vmem:[%s4 + $0x10] sm:$0xff]
  %v88 = vld [vmem:[%s4 + $0x18] sm:$0xff]
  %v90 = vsel %vm29, %v84, 0
  %92 = vmatpush.msra.mxu0 0.0
  %93 = vmatpush.msra.mxu0 0.0
  %94 = vmatpush.msra.mxu0 0.0
  %95 = vmatpush.msra.mxu0 0.0
  %96 = vmatpush.msra.mxu0 0.0
  %97 = vmatpush.msra.mxu0 0.0
  %98 = vmatpush.msra.mxu0 0.0
  %99 = vmatpush.msra.mxu0 0.0
  %100 = vmatpush.msra.mxu0 0.0
  %101 = vmatpush.msra.mxu0 0.0
  %102 = vmatpush.msra.mxu0 0.0
  %103 = vmatpush.msra.mxu0 0.0
  %104 = vmatpush.msra.mxu0 %v88
  %105 = vmatpush.msra.mxu0 %v87
  %106 = vmatpush.msra.mxu0 %v86
  %107 = vmatpush.msra.mxu0 %v85
  %108 = vmatmul.f32.gmra.mxu0 %v90
  %v109 = vpop.f32.mrf.mxu0
  %v110 = vadd.f32 0.0, %v109
  %111 = vdwg.mxu0
  %v113 = vsel %vm29, %v79, 0
  %115 = vmatpush.msra.mxu0 0.0
  %116 = vmatpush.msra.mxu0 0.0
  %117 = vmatpush.msra.mxu0 0.0
  %118 = vmatpush.msra.mxu0 0.0
  %119 = vmatpush.msra.mxu0 0.0
  %120 = vmatpush.msra.mxu0 0.0
  %121 = vmatpush.msra.mxu0 0.0
  %122 = vmatpush.msra.mxu0 0.0
  %123 = vmatpush.msra.mxu0 0.0
  %124 = vmatpush.msra.mxu0 0.0
  %125 = vmatpush.msra.mxu0 0.0
  %126 = vmatpush.msra.mxu0 0.0
  %127 = vmatpush.msra.mxu0 %v83
  %128 = vmatpush.msra.mxu0 %v82
  %129 = vmatpush.msra.mxu0 %v81
  %130 = vmatpush.msra.mxu0 %v80
  %131 = vmatmul.f32.gmra.mxu0 %v113
  %v132 = vpop.f32.mrf.mxu0
  %v133 = vadd.f32 %v110, %v132
  %134 = vdwg.mxu0
  %135 = vst [vmem:[%s5] sm:$0xff] %v133
  // Predicated region
  $region22: #{fpn_forward.1} parent=0 // pred_check
    _
  $region23: #{fpn_forward.1} parent=0 // pred_check_branch
    %137 = sbr.rel (0) target = $region25
  $region24: #{fpn_forward.1} parent=0 // pred_region
    _
  $region25: #{fpn_forward.1} parent=0 // pred_fallthru
    _
  // Predicated region
  $region26: #{fpn_forward.1} parent=0 // pred_check
    _
  $region27: #{fpn_forward.1} parent=0 // pred_check_branch
    %139 = sbr.rel (0) target = $region29
  $region28: #{fpn_forward.1} parent=0 // pred_region
    _
  $region29: #{fpn_forward.1} parent=0 // pred_fallthru
    _

</llo_original>
